<compile_context>
chip_gen: v7x
topology: tpu7x:2x2x1
jax: 0.10.0
libtpu: 0.0.40
codegen_flags: <defaults>
</compile_context>

<pallas_src>
import functools
import math

import jax
import jax.numpy as jnp
from jax import lax
from jax.experimental import pallas as pl
from jax.experimental.pallas import tpu as pltpu

_MB = 1024 * 1024
# Keep the scalar-prefetched id array comfortably inside SMEM (64K ids =
# 256 KiB); larger batch*seq is processed in independent per-chunk calls.
_MAX_IDS_PER_CALL = 64 * 1024


def _round_up(n, m):
    return ((n + m - 1) // m) * m


# ---------------------------------------------------------------------------
# Fast path: VMEM-resident table, one-hot MXU gather.
# ---------------------------------------------------------------------------
def _onehot_embed_kernel(tok_ref, emb_ref, out_ref, *, scale):
    # tok_ref : (tb, 1) int32 token ids for this tile (VMEM)
    # emb_ref : (V, D) embedding table, VMEM-resident (constant index map)
    # out_ref : (tb, D) output tile
    tb = out_ref.shape[0]
    vocab = emb_ref.shape[0]
    tok_col = tok_ref[...]                                        # (tb, 1)
    vocab_iota = lax.broadcasted_iota(jnp.int32, (tb, vocab), 1)  # (tb, V)
    onehot = (tok_col == vocab_iota).astype(emb_ref.dtype)        # (tb, V)
    acc = jnp.dot(onehot, emb_ref[...], preferred_element_type=jnp.float32)
    out_ref[...] = (acc * scale).astype(out_ref.dtype)


def _embed_small_vocab(tokens, table, n_tokens):
    vocab, d_model = table.shape
    esize = jnp.dtype(table.dtype).itemsize
    scale = math.sqrt(d_model)

    # Tile size: keep both the (tb, V) one-hot and the (tb, D) output tile
    # <= ~2 MiB each; lane-aligned (multiple of 128).
    tb = 512
    while tb > 128 and (tb * vocab * esize > 2 * _MB
                        or tb * d_model * esize > 2 * _MB):
        tb //= 2
    tb = min(tb, _round_up(n_tokens, 128))        # don't over-pad tiny inputs
    if n_tokens <= tb and n_tokens > 256:
        # Prefer >= 2 grid steps so both v7x TensorCores get work.
        tb = max(128, _round_up((n_tokens + 1) // 2, 128))

    n_padded = _round_up(n_tokens, tb)
    if n_padded != n_tokens:
        tokens = jnp.pad(tokens, (0, n_padded - n_tokens))
    n_tiles = n_padded // tb
    tokens3 = tokens.reshape(n_tiles, tb, 1)

    kernel = functools.partial(_onehot_embed_kernel, scale=scale)
    return pl.pallas_call(
        kernel,
        out_shape=jax.ShapeDtypeStruct((n_padded, d_model), table.dtype),
        grid=(n_tiles,),
        in_specs=[
            pl.BlockSpec((None, tb, 1), lambda i: (i, 0, 0)),   # per-tile ids
            pl.BlockSpec((vocab, d_model), lambda i: (0, 0)),   # VMEM-resident
        ],
        out_specs=pl.BlockSpec((tb, d_model), lambda i: (i, 0)),
        compiler_params=pltpu.CompilerParams(
            dimension_semantics=("parallel",),
            vmem_limit_bytes=32 * _MB,
        ),
    )(tokens3, table)


# ---------------------------------------------------------------------------
# Large-vocab path: table in HBM, per-row DMA gather driven by SMEM ids.
# ---------------------------------------------------------------------------
def _hbm_gather_kernel(tok_ref, emb_hbm, out_ref, sem, *,
                       token_block, scale, unroll):
    # tok_ref : (n_padded,) int32 ids in SMEM (scalar prefetch)
    # emb_hbm : (V, D) table left in HBM (memory_space=pl.ANY)
    # out_ref : (token_block, D) pipelined VMEM output tile
    # sem     : shared DMA semaphore
    base = pl.program_id(0) * token_block

    # Issue all row DMAs for this tile.  Unrolled: descriptor issue is the
    # critical path, so let the scheduler pipeline SMEM id loads with the
    # descriptor pushes.  Padding rows re-fetch token `base+t` (clamped) so
    # start/wait counts stay exactly balanced on the shared semaphore.
    def _issue(t, carry):
        tok = tok_ref[base + t]
        pltpu.make_async_copy(
            emb_hbm.at[pl.ds(tok, 1), :],
            out_ref.at[pl.ds(t, 1), :],
            sem,
        ).start()
        return carry

    lax.fori_loop(0, token_block, _issue, 0, unroll=unroll)

    # Drain: one wait per issued copy, but with a fixed-source descriptor so
    # no SMEM id re-reads are interleaved with .wait().  All copies are the
    # same (1, D) size, so any same-size descriptor drains one completion.
    def _drain(t, carry):
        pltpu.make_async_copy(
            emb_hbm.at[pl.ds(0, 1), :],
            out_ref.at[pl.ds(t, 1), :],
            sem,
        ).wait()
        return carry

    lax.fori_loop(0, token_block, _drain, 0, unroll=unroll)

    # Fused sqrt(d_model) scaling; also the data-dep that orders the gather
    # DMAs before the pipeline writes this tile back to HBM.
    out_ref[...] = out_ref[...] * jnp.asarray(scale, dtype=out_ref.dtype)


def _embed_large_vocab_chunk(tokens, table, n_tokens, token_block):
    vocab, d_model = table.shape
    esize = jnp.dtype(table.dtype).itemsize
    scale = math.sqrt(d_model)

    # Cap the output tile at 4 MiB: double-buffered that is 8 MiB, safely under
    # v5e's 16 MiB scoped-VMEM default and v7x's 64 MiB physical VMEM.
    row_bytes = d_model * esize
    max_rows = max(8, ((4 * _MB) // max(row_bytes, 1)) // 8 * 8)
    tb = min(token_block, max_rows)
    tb = min(tb, _round_up(n_tokens, 8))          # don't over-pad tiny inputs
    if n_tokens <= tb and n_tokens > 64:
        # Prefer >= 2 grid steps so both v7x TensorCores get work.
        tb = max(8, _round_up((n_tokens + 1) // 2, 8))
    tb = max(8, tb - (tb % 8))                    # sublane-aligned tile rows

    n_padded = _round_up(n_tokens, tb)
    if n_padded != n_tokens:
        tokens = jnp.pad(tokens, (0, n_padded - n_tokens))
    n_tiles = n_padded // tb

    unroll = True if tb <= 64 else 8
    kernel = functools.partial(
        _hbm_gather_kernel, token_block=tb, scale=scale, unroll=unroll)

    out = pl.pallas_call(
        kernel,
        out_shape=jax.ShapeDtypeStruct((n_padded, d_model), table.dtype),
        grid_spec=pltpu.PrefetchScalarGridSpec(
            num_scalar_prefetch=1,                         # ids -> SMEM
            grid=(n_tiles,),
            in_specs=[pl.BlockSpec(memory_space=pl.ANY)],  # table stays in HBM
            out_specs=pl.BlockSpec((tb, d_model), lambda i, tok: (i, 0)),
            scratch_shapes=[pltpu.SemaphoreType.DMA],
        ),
        compiler_params=pltpu.CompilerParams(
            dimension_semantics=("parallel",),
            vmem_limit_bytes=32 * _MB,
        ),
    )(tokens, table)
    return out[:n_tokens]


# ---------------------------------------------------------------------------
# Public wrapper == InputEmbeddings.forward
# ---------------------------------------------------------------------------
def input_embeddings(x, embedding_table, *, token_block=256):
    """x: (B, S) integer token ids; embedding_table: (V, D).
    Returns (B, S, D) == embedding(x) * sqrt(D)."""
    batch, seq = x.shape
    vocab, d_model = embedding_table.shape
    n = batch * seq
    esize = jnp.dtype(embedding_table.dtype).itemsize

    # Clamp ids to [0, V-1] (jnp.take-style clipping; nn.Embedding would raise
    # on out-of-range ids -- documented semantic difference).
    tokens = jnp.clip(x.reshape(-1).astype(jnp.int32), 0, vocab - 1)

    table_bytes = vocab * d_model * esize
    if vocab <= 1024 and table_bytes <= 4 * _MB:
        out = _embed_small_vocab(tokens, embedding_table, n)[:n]
    elif n <= _MAX_IDS_PER_CALL:
        out = _embed_large_vocab_chunk(tokens, embedding_table, n, token_block)
    else:
        chunks = []
        for start in range(0, n, _MAX_IDS_PER_CALL):
            stop = min(start + _MAX_IDS_PER_CALL, n)
            chunks.append(_embed_large_vocab_chunk(
                tokens[start:stop], embedding_table, stop - start, token_block))
        out = jnp.concatenate(chunks, axis=0)

    return out.reshape(batch, seq, d_model)


if __name__ == "__main__":
    d_model = 128
    batch, seq = 2, 8
    key = jax.random.PRNGKey(0)
    k_emb, k_tok, k_emb2, k_tok2 = jax.random.split(key, 4)

    # 1) Small vocab -> VMEM-resident one-hot MXU fast path.
    vocab_small = 256
    table_small = jax.random.normal(k_emb, (vocab_small, d_model),
                                    dtype=jnp.float32)   # nn.Embedding ~ N(0,1)
    x_small = jax.random.randint(k_tok, (batch, seq), 0, vocab_small,
                                 dtype=jnp.int32)
    out_small = jax.block_until_ready(input_embeddings(x_small, table_small))
    ref_small = jnp.take(table_small, x_small, axis=0) * math.sqrt(d_model)
    assert out_small.shape == (batch, seq, d_model)
    assert jnp.allclose(out_small, ref_small, atol=1e-5, rtol=1e-5)

    # 2) Larger vocab -> HBM-resident table, SMEM-id DMA-gather path.
    vocab_large = 2048
    table_large = jax.random.normal(k_emb2, (vocab_large, d_model),
                                    dtype=jnp.float32)
    x_large = jax.random.randint(k_tok2, (batch, seq), 0, vocab_large,
                                 dtype=jnp.int32)
    out_large = jax.block_until_ready(input_embeddings(x_large, table_large))
    ref_large = jnp.take(table_large, x_large, axis=0) * math.sqrt(d_model)
    assert out_large.shape == (batch, seq, d_model)
    assert jnp.allclose(out_large, ref_large, atol=1e-5, rtol=1e-5)

    print("KERNEL_OK")
</pallas_src>

<mosaic_0001>
module attributes {stable_mosaic.version = 11 : i64} {
  func.func @_onehot_embed_kernel(%arg0: i32, %arg1: memref<1x128x1xi32, #tpu.memory_space<vmem>>, %arg2: memref<256x128xf32, #tpu.memory_space<vmem>>, %arg3: memref<128x128xf32, #tpu.memory_space<vmem>>) attributes {dimension_semantics = [#tpu.dimension_semantics<parallel>], iteration_bounds = array<i64: 1>, scalar_prefetch = 0 : i64, scratch_operands = 0 : i64, tpu.core_type = #tpu.core_type<tc>, window_params = [{transform_indices = @transform_0, window_bounds = array<i64: 1, 128, 1>}, {pipeline_mode = #tpu.pipeline_mode<synchronous>, transform_indices = @transform_1, window_bounds = array<i64: 256, 128>}, {transform_indices = @transform_2, window_bounds = array<i64: 128, 128>}]} {
    %c0 = arith.constant 0 : index
    %c0_0 = arith.constant 0 : index
    %c0_1 = arith.constant 0 : index
    %0 = vector.load %arg1[%c0, %c0_0, %c0_1] : memref<1x128x1xi32, #tpu.memory_space<vmem>>, vector<1x128x1xi32>
    %1 = vector.shape_cast %0 : vector<1x128x1xi32> to vector<128x1xi32>
    %2 = tpu.iota {dimensions = array<i32: 1>} : vector<128x256xi32>
    %3 = vector.broadcast %1 : vector<128x1xi32> to vector<128x256xi32>
    %4 = arith.cmpi eq, %3, %2 : vector<128x256xi32>
    %5 = arith.extui %4 : vector<128x256xi1> to vector<128x256xi32>
    %6 = arith.sitofp %5 : vector<128x256xi32> to vector<128x256xf32>
    %c0_2 = arith.constant 0 : index
    %c0_3 = arith.constant 0 : index
    %7 = vector.load %arg2[%c0_2, %c0_3] : memref<256x128xf32, #tpu.memory_space<vmem>>, vector<256x128xf32>
    %cst = arith.constant dense<0.000000e+00> : vector<128x128xf32>
    %8 = tpu.matmul %6, %7, %cst {dimension_numbers = #tpu.dot_dimension_numbers<[1], [0], [0], [1], [0, 0, 1, 1], [], []>} : vector<128x256xf32>, vector<256x128xf32>, vector<128x128xf32> -> vector<128x128xf32>
    %cst_4 = arith.constant 11.3137083 : f32
    %9 = vector.broadcast %cst_4 : f32 to vector<128x128xf32>
    %10 = arith.mulf %8, %9 : vector<128x128xf32>
    %c0_5 = arith.constant 0 : index
    %c0_6 = arith.constant 0 : index
    %11 = vector.load %arg3[%c0_5, %c0_6] : memref<128x128xf32, #tpu.memory_space<vmem>>, vector<128x128xf32>
    tpu.vector_store %arg3[%c0_5, %c0_6], %10 {strides = array<i32>} : memref<128x128xf32, #tpu.memory_space<vmem>>, vector<128x128xf32>,
    return
  }
  func.func @transform_0(%arg0: i32) -> (i32, i32, i32) {
    %c0_i32 = arith.constant 0 : i32
    %c0_i32_0 = arith.constant 0 : i32
    %c0_i32_1 = arith.constant 0 : i32
    return %arg0, %c0_i32, %c0_i32_0 : i32, i32, i32
  }
  func.func @transform_1(%arg0: i32) -> (i32, i32) {
    %c0_i32 = arith.constant 0 : i32
    %c0_i32_0 = arith.constant 0 : i32
    %c0_i32_1 = arith.constant 0 : i32
    return %c0_i32, %c0_i32_0 : i32, i32
  }
  func.func @transform_2(%arg0: i32) -> (i32, i32) {
    %c0_i32 = arith.constant 0 : i32
    %c0_i32_0 = arith.constant 0 : i32
    return %arg0, %c0_i32 : i32, i32
  }
}

</mosaic_0001>

<llo_original>
// kernel: tpu_custom_call.1
$region0: #{tpu_custom_call.1}
  #allocation0 [shape = 'u32[]', space=smem, size = 0x4, offset = 0x4, fixed_abs, tag = 'smem constant byte address 0x4 - core index']
  #allocation1 [shape = 'u32[144,128]{1,0:T(1,128)}', space=vmem, size = 0x12000, scoped, tag = 'internal scratch']
  %s0 = inlined_call_operand.vmem [shape: s32[1,128,1], index: 0, kind: input, shape index: {}]
  %s1 = inlined_call_operand.hbm [shape: f32[256,128], index: 1, kind: input, shape index: {}]
  %s2 = inlined_call_operand.hbm [shape: f32[128,128], index: 2, kind: output, shape index: {}]
  %s3 = sld [smem:[#allocation0]]
  $region22: #{tpu_custom_call.1} parent=0
    _
  %s5 = ssub.s32 1, %s3
  %s6 = scalar_select 0, %s5, %s3
  $region1: #{tpu_custom_call.1} parent=0
    #allocation2 [shape = 'u8[131072]{0}', space=vmem, size = 0x20000, scoped, tag = 'input window, operand 1, single buffered']
    #allocation3 [shape = 's32[1]{0}', space=sflag, size = 0x4, scoped, tag = 'scoped memory for tpu_custom_call.1']
    #allocation4 [shape = 's32[1]{0}', space=sflag, size = 0x4, scoped, tag = 'scoped memory for tpu_custom_call.1']
    #allocation5 [shape = 'u8[65536]{0}', space=vmem, size = 0x10000, scoped, tag = 'output window, operand 0, single buffered']
    %7 = vsyncpa [#allocation3], 0
    %8 = vsyncpa [#allocation4], 0
    // Predicated region
    $region2: #{tpu_custom_call.1} parent=1 // pred_check
      _
    $region3: #{tpu_custom_call.1} parent=1 // pred_check_branch
      %10 = sbr.rel (0) target = $region5
    $region4: #{tpu_custom_call.1} parent=1 // pred_region
      _
    $region5: #{tpu_custom_call.1} parent=1 // pred_fallthru
      _
    // Predicated region
    $region6: #{tpu_custom_call.1} parent=1 // pred_check
      _
    $region7: #{tpu_custom_call.1} parent=1 // pred_check_branch
      %12 = sbr.rel (0) target = $region9
    $region8: #{tpu_custom_call.1} parent=1 // pred_region
      %s14 = ssub.s32 4096, 4096
      %15 = vsyncadd [#allocation3], %s14
      %s16 = sshll.u32 [#allocation2], 4
      %s17 = int_to_ptr.vmem [resolvable:$true] %s16
      %22 = dma.hbm_to_vmem [thread:$0]  %s1, 4096, %s17, [#allocation3], 128, 128, 8
    $region9: #{tpu_custom_call.1} parent=1 // pred_fallthru
      _
    // Predicated region
    $region10: #{tpu_custom_call.1} parent=1 // pred_check
      _
    $region11: #{tpu_custom_call.1} parent=1 // pred_check_branch
      %24 = sbr.rel (0) target = $region13
    $region12: #{tpu_custom_call.1} parent=1 // pred_region
      %25 = dma.done [#allocation3], 4096
    $region13: #{tpu_custom_call.1} parent=1 // pred_fallthru
      _
    %v26 = vld [vmem:[%s0] sm:$0xff]
    %v27 = vld [vmem:[%s0 + $0x8] sm:$0xff]
    %v28 = vld [vmem:[%s0 + $0x10] sm:$0xff]
    %v29 = vld [vmem:[%s0 + $0x18] sm:$0xff]
    %v30 = vld [vmem:[%s0 + $0x20] sm:$0xff]
    %v31 = vld [vmem:[%s0 + $0x28] sm:$0xff]
    %v32 = vld [vmem:[%s0 + $0x30] sm:$0xff]
    %v33 = vld [vmem:[%s0 + $0x38] sm:$0xff]
    %v34 = vld [vmem:[%s0 + $0x40] sm:$0xff]
    %v35 = vld [vmem:[%s0 + $0x48] sm:$0xff]
    %v36 = vld [vmem:[%s0 + $0x50] sm:$0xff]
    %v37 = vld [vmem:[%s0 + $0x58] sm:$0xff]
    %v38 = vld [vmem:[%s0 + $0x60] sm:$0xff]
    %v39 = vld [vmem:[%s0 + $0x68] sm:$0xff]
    %v40 = vld [vmem:[%s0 + $0x70] sm:$0xff]
    %v41 = vld [vmem:[%s0 + $0x78] sm:$0xff]
    %v42 = vlaneseq
    %v43 = vand.u32 %v42, 127
    %v44 = vadd.s32 %v43, 128
    %45 = vset.pattern.permute.xlu0 0
    %46 = vperm.xlu0 %45, %v26
    %v47 = vpop.permute.xlu0 %46
    %48 = vset.pattern.permute.xlu0 0
    %49 = vperm.xlu0 %48, %v27
    %v50 = vpop.permute.xlu0 %49
    %51 = vset.pattern.permute.xlu0 0
    %52 = vperm.xlu0 %51, %v28
    %v53 = vpop.permute.xlu0 %52
    %54 = vset.pattern.permute.xlu0 0
    %55 = vperm.xlu0 %54, %v29
    %v56 = vpop.permute.xlu0 %55
    %57 = vset.pattern.permute.xlu0 0
    %58 = vperm.xlu0 %57, %v30
    %v59 = vpop.permute.xlu0 %58
    %60 = vset.pattern.permute.xlu0 0
    %61 = vperm.xlu0 %60, %v31
    %v62 = vpop.permute.xlu0 %61
    %63 = vset.pattern.permute.xlu0 0
    %64 = vperm.xlu0 %63, %v32
    %v65 = vpop.permute.xlu0 %64
    %66 = vset.pattern.permute.xlu0 0
    %67 = vperm.xlu0 %66, %v33
    %v68 = vpop.permute.xlu0 %67
    %69 = vset.pattern.permute.xlu0 0
    %70 = vperm.xlu0 %69, %v34
    %v71 = vpop.permute.xlu0 %70
    %72 = vset.pattern.permute.xlu0 0
    %73 = vperm.xlu0 %72, %v35
    %v74 = vpop.permute.xlu0 %73
    %75 = vset.pattern.permute.xlu0 0
    %76 = vperm.xlu0 %75, %v36
    %v77 = vpop.permute.xlu0 %76
    %78 = vset.pattern.permute.xlu0 0
    %79 = vperm.xlu0 %78, %v37
    %v80 = vpop.permute.xlu0 %79
    %81 = vset.pattern.permute.xlu0 0
    %82 = vperm.xlu0 %81, %v38
    %v83 = vpop.permute.xlu0 %82
    %84 = vset.pattern.permute.xlu0 0
    %85 = vperm.xlu0 %84, %v39
    %v86 = vpop.permute.xlu0 %85
    %87 = vset.pattern.permute.xlu0 0
    %88 = vperm.xlu0 %87, %v40
    %v89 = vpop.permute.xlu0 %88
    %90 = vset.pattern.permute.xlu0 0
    %91 = vperm.xlu0 %90, %v41
    %v92 = vpop.permute.xlu0 %91
    %vm93 = vcmp.eq.s32.totalorder %v47, %v43
    %vm94 = vcmp.eq.s32.totalorder %v47, %v44
    %vm95 = vcmp.eq.s32.totalorder %v50, %v43
    %vm96 = vcmp.eq.s32.totalorder %v50, %v44
    %vm97 = vcmp.eq.s32.totalorder %v53, %v43
    %vm98 = vcmp.eq.s32.totalorder %v53, %v44
    %vm99 = vcmp.eq.s32.totalorder %v56, %v43
    %vm100 = vcmp.eq.s32.totalorder %v56, %v44
    %vm101 = vcmp.eq.s32.totalorder %v59, %v43
    %vm102 = vcmp.eq.s32.totalorder %v59, %v44
    %vm103 = vcmp.eq.s32.totalorder %v62, %v43
    %vm104 = vcmp.eq.s32.totalorder %v62, %v44
    %vm105 = vcmp.eq.s32.totalorder %v65, %v43
    %vm106 = vcmp.eq.s32.totalorder %v65, %v44
    %vm107 = vcmp.eq.s32.totalorder %v68, %v43
    %vm108 = vcmp.eq.s32.totalorder %v68, %v44
    %vm109 = vcmp.eq.s32.totalorder %v71, %v43
    %vm110 = vcmp.eq.s32.totalorder %v71, %v44
    %vm111 = vcmp.eq.s32.totalorder %v74, %v43
    %vm112 = vcmp.eq.s32.totalorder %v74, %v44
    %vm113 = vcmp.eq.s32.totalorder %v77, %v43
    %vm114 = vcmp.eq.s32.totalorder %v77, %v44
    %vm115 = vcmp.eq.s32.totalorder %v80, %v43
    %vm116 = vcmp.eq.s32.totalorder %v80, %v44
    %vm117 = vcmp.eq.s32.totalorder %v83, %v43
    %vm118 = vcmp.eq.s32.totalorder %v83, %v44
    %vm119 = vcmp.eq.s32.totalorder %v86, %v43
    %vm120 = vcmp.eq.s32.totalorder %v86, %v44
    %vm121 = vcmp.eq.s32.totalorder %v89, %v43
    %vm122 = vcmp.eq.s32.totalorder %v89, %v44
    %vm123 = vcmp.eq.s32.totalorder %v92, %v43
    %vm124 = vcmp.eq.s32.totalorder %v92, %v44
    %v125 = vsel %vm93, 1, 0
    %v126 = vsel %vm94, 1, 0
    %v127 = vsel %vm95, 1, 0
    %v128 = vsel %vm96, 1, 0
    %v129 = vsel %vm97, 1, 0
    %v130 = vsel %vm98, 1, 0
    %v131 = vsel %vm99, 1, 0
    %v132 = vsel %vm100, 1, 0
    %v133 = vsel %vm101, 1, 0
    %v134 = vsel %vm102, 1, 0
    %v135 = vsel %vm103, 1, 0
    %v136 = vsel %vm104, 1, 0
    %v137 = vsel %vm105, 1, 0
    %v138 = vsel %vm106, 1, 0
    %v139 = vsel %vm107, 1, 0
    %v140 = vsel %vm108, 1, 0
    %v141 = vsel %vm109, 1, 0
    %v142 = vsel %vm110, 1, 0
    %v143 = vsel %vm111, 1, 0
    %v144 = vsel %vm112, 1, 0
    %v145 = vsel %vm113, 1, 0
    %v146 = vsel %vm114, 1, 0
    %v147 = vsel %vm115, 1, 0
    %v148 = vsel %vm116, 1, 0
    %v149 = vsel %vm117, 1, 0
    %v150 = vsel %vm118, 1, 0
    %v151 = vsel %vm119, 1, 0
    %v152 = vsel %vm120, 1, 0
    %v153 = vsel %vm121, 1, 0
    %v154 = vsel %vm122, 1, 0
    %v155 = vsel %vm123, 1, 0
    %v156 = vsel %vm124, 1, 0
    %v157 = vcvt.s32.f32 %v125
    %v158 = vcvt.s32.f32 %v126
    %v159 = vcvt.s32.f32 %v127
    %v160 = vcvt.s32.f32 %v128
    %v161 = vcvt.s32.f32 %v129
    %v162 = vcvt.s32.f32 %v130
    %v163 = vcvt.s32.f32 %v131
    %v164 = vcvt.s32.f32 %v132
    %v165 = vcvt.s32.f32 %v133
    %v166 = vcvt.s32.f32 %v134
    %v167 = vcvt.s32.f32 %v135
    %v168 = vcvt.s32.f32 %v136
    %v169 = vcvt.s32.f32 %v137
    %v170 = vcvt.s32.f32 %v138
    %v171 = vcvt.s32.f32 %v139
    %v172 = vcvt.s32.f32 %v140
    %v173 = vcvt.s32.f32 %v141
    %v174 = vcvt.s32.f32 %v142
    %v175 = vcvt.s32.f32 %v143
    %v176 = vcvt.s32.f32 %v144
    %v177 = vcvt.s32.f32 %v145
    %v178 = vcvt.s32.f32 %v146
    %v179 = vcvt.s32.f32 %v147
    %v180 = vcvt.s32.f32 %v148
    %v181 = vcvt.s32.f32 %v149
    %v182 = vcvt.s32.f32 %v150
    %v183 = vcvt.s32.f32 %v151
    %v184 = vcvt.s32.f32 %v152
    %v185 = vcvt.s32.f32 %v153
    %v186 = vcvt.s32.f32 %v154
    %v187 = vcvt.s32.f32 %v155
    %v188 = vcvt.s32.f32 %v156
    %v189 = vld [vmem:[#allocation2] sm:$0xff]
    %v190 = vld [vmem:[#allocation2 + $0x8] sm:$0xff]
    %v191 = vld [vmem:[#allocation2 + $0x10] sm:$0xff]
    %v192 = vld [vmem:[#allocation2 + $0x18] sm:$0xff]
    %v193 = vld [vmem:[#allocation2 + $0x20] sm:$0xff]
    %v194 = vld [vmem:[#allocation2 + $0x28] sm:$0xff]
    %v195 = vld [vmem:[#allocation2 + $0x30] sm:$0xff]
    %v196 = vld [vmem:[#allocation2 + $0x38] sm:$0xff]
    %v197 = vld [vmem:[#allocation2 + $0x40] sm:$0xff]
    %v198 = vld [vmem:[#allocation2 + $0x48] sm:$0xff]
    %v199 = vld [vmem:[#allocation2 + $0x50] sm:$0xff]
    %v200 = vld [vmem:[#allocation2 + $0x58] sm:$0xff]
    %v201 = vld [vmem:[#allocation2 + $0x60] sm:$0xff]
    %v202 = vld [vmem:[#allocation2 + $0x68] sm:$0xff]
    %v203 = vld [vmem:[#allocation2 + $0x70] sm:$0xff]
    %v204 = vld [vmem:[#allocation2 + $0x78] sm:$0xff]
    %v205 = vld [vmem:[#allocation2 + $0x80] sm:$0xff]
    %v206 = vld [vmem:[#allocation2 + $0x88] sm:$0xff]
    %v207 = vld [vmem:[#allocation2 + $0x90] sm:$0xff]
    %v208 = vld [vmem:[#allocation2 + $0x98] sm:$0xff]
    %v209 = vld [vmem:[#allocation2 + $0xa0] sm:$0xff]
    %v210 = vld [vmem:[#allocation2 + $0xa8] sm:$0xff]
    %v211 = vld [vmem:[#allocation2 + $0xb0] sm:$0xff]
    %v212 = vld [vmem:[#allocation2 + $0xb8] sm:$0xff]
    %v213 = vld [vmem:[#allocation2 + $0xc0] sm:$0xff]
    %v214 = vld [vmem:[#allocation2 + $0xc8] sm:$0xff]
    %v215 = vld [vmem:[#allocation2 + $0xd0] sm:$0xff]
    %v216 = vld [vmem:[#allocation2 + $0xd8] sm:$0xff]
    %v217 = vld [vmem:[#allocation2 + $0xe0] sm:$0xff]
    %v218 = vld [vmem:[#allocation2 + $0xe8] sm:$0xff]
    %v219 = vld [vmem:[#allocation2 + $0xf0] sm:$0xff]
    %v220 = vld [vmem:[#allocation2 + $0xf8] sm:$0xff]
    %221 = vmatprep.subr.mxu0 0.0
    %222 = vmatpush1.msra.mxu0 %v189
    %223 = vmatprep.subr.mxu0 0.0
    %224 = vmatpush1.msra.mxu0 %v190
    %225 = vmatprep.subr.mxu0 0.0
    %226 = vmatpush1.msra.mxu0 %v191
    %227 = vmatprep.subr.mxu0 0.0
    %228 = vmatpush1.msra.mxu0 %v192
    %229 = vmatprep.subr.mxu0 0.0
    %230 = vmatpush1.msra.mxu0 %v193
    %231 = vmatprep.subr.mxu0 0.0
    %232 = vmatpush1.msra.mxu0 %v194
    %233 = vmatprep.subr.mxu0 0.0
    %234 = vmatpush1.msra.mxu0 %v195
    %235 = vmatprep.subr.mxu0 0.0
    %236 = vmatpush1.msra.mxu0 %v196
    %237 = vmatprep.subr.mxu0 0.0
    %238 = vmatpush1.msra.mxu0 %v197
    %239 = vmatprep.subr.mxu0 0.0
    %240 = vmatpush1.msra.mxu0 %v198
    %241 = vmatprep.subr.mxu0 0.0
    %242 = vmatpush1.msra.mxu0 %v199
    %243 = vmatprep.subr.mxu0 0.0
    %244 = vmatpush1.msra.mxu0 %v200
    %245 = vmatprep.subr.mxu0 0.0
    %246 = vmatpush1.msra.mxu0 %v201
    %247 = vmatprep.subr.mxu0 0.0
    %248 = vmatpush1.msra.mxu0 %v202
    %249 = vmatprep.subr.mxu0 0.0
    %250 = vmatpush1.msra.mxu0 %v203
    %251 = vmatprep.subr.mxu0 0.0
    %252 = vmatpush1.msra.mxu0 %v204
    %253 = vmatprep.subr.mxu0 0.0
    %254 = vmatpush1.msra.mxu0 %v205
    %255 = vmatprep.subr.mxu0 0.0
    %256 = vmatpush1.msra.mxu0 %v206
    %257 = vmatprep.subr.mxu0 0.0
    %258 = vmatpush1.msra.mxu0 %v207
    %259 = vmatprep.subr.mxu0 0.0
    %260 = vmatpush1.msra.mxu0 %v208
    %261 = vmatprep.subr.mxu0 0.0
    %262 = vmatpush1.msra.mxu0 %v209
    %263 = vmatprep.subr.mxu0 0.0
    %264 = vmatpush1.msra.mxu0 %v210
    %265 = vmatprep.subr.mxu0 0.0
    %266 = vmatpush1.msra.mxu0 %v211
    %267 = vmatprep.subr.mxu0 0.0
    %268 = vmatpush1.msra.mxu0 %v212
    %269 = vmatprep.subr.mxu0 0.0
    %270 = vmatpush1.msra.mxu0 %v213
    %271 = vmatprep.subr.mxu0 0.0
    %272 = vmatpush1.msra.mxu0 %v214
    %273 = vmatprep.subr.mxu0 0.0
    %274 = vmatpush1.msra.mxu0 %v215
    %275 = vmatprep.subr.mxu0 0.0
    %276 = vmatpush1.msra.mxu0 %v216
    %277 = vmatprep.subr.mxu0 0.0
    %278 = vmatpush1.msra.mxu0 %v217
    %279 = vmatprep.subr.mxu0 0.0
    %280 = vmatpush1.msra.mxu0 %v218
    %281 = vmatprep.subr.mxu0 0.0
    %282 = vmatpush1.msra.mxu0 %v219
    %283 = vmatprep.subr.mxu0 0.0
    %284 = vmatpush1.msra.mxu0 %v220
    %285 = vmatprep.mubr.f32.mxu0 %v158
    %286 = vmatmul.mubr.f32.gmra.mrb[0].mxu0 %v157
    %v287 = vpop.f32.mrb[0].mxu0
    %v288 = vadd.f32 0.0, %v287
    %v289 = vpop.f32.mrb[0].mxu0
    %290 = vmatprep.mubr.f32.mxu0 %v160
    %291 = vmatmul.mubr.f32.gmra.mrb[0].mxu0 %v159
    %v292 = vpop.f32.mrb[0].mxu0
    %v293 = vadd.f32 0.0, %v292
    %v294 = vpop.f32.mrb[0].mxu0
    %295 = vmatprep.mubr.f32.mxu0 %v162
    %296 = vmatmul.mubr.f32.gmra.mrb[0].mxu0 %v161
    %v297 = vpop.f32.mrb[0].mxu0
    %v298 = vadd.f32 0.0, %v297
    %v299 = vpop.f32.mrb[0].mxu0
    %300 = vmatprep.mubr.f32.mxu0 %v164
    %301 = vmatmul.mubr.f32.gmra.mrb[0].mxu0 %v163
    %v302 = vpop.f32.mrb[0].mxu0
    %v303 = vadd.f32 0.0, %v302
    %v304 = vpop.f32.mrb[0].mxu0
    %305 = vmatprep.mubr.f32.mxu0 %v166
    %306 = vmatmul.mubr.f32.gmra.mrb[0].mxu0 %v165
    %v307 = vpop.f32.mrb[0].mxu0
    %v308 = vadd.f32 0.0, %v307
    %v309 = vpop.f32.mrb[0].mxu0
    %310 = vmatprep.mubr.f32.mxu0 %v168
    %311 = vmatmul.mubr.f32.gmra.mrb[0].mxu0 %v167
    %v312 = vpop.f32.mrb[0].mxu0
    %v313 = vadd.f32 0.0, %v312
    %v314 = vpop.f32.mrb[0].mxu0
    %315 = vmatprep.mubr.f32.mxu0 %v170
    %316 = vmatmul.mubr.f32.gmra.mrb[0].mxu0 %v169
    %v317 = vpop.f32.mrb[0].mxu0
    %v318 = vadd.f32 0.0, %v317
    %v319 = vpop.f32.mrb[0].mxu0
    %320 = vmatprep.mubr.f32.mxu0 %v172
    %321 = vmatmul.mubr.f32.gmra.mrb[0].mxu0 %v171
    %v322 = vpop.f32.mrb[0].mxu0
    %v323 = vadd.f32 0.0, %v322
    %v324 = vpop.f32.mrb[0].mxu0
    %325 = vmatprep.mubr.f32.mxu0 %v174
    %326 = vmatmul.mubr.f32.gmra.mrb[0].mxu0 %v173
    %v327 = vpop.f32.mrb[0].mxu0
    %v328 = vadd.f32 0.0, %v327
    %v329 = vpop.f32.mrb[0].mxu0
    %330 = vmatprep.mubr.f32.mxu0 %v176
    %331 = vmatmul.mubr.f32.gmra.mrb[0].mxu0 %v175
    %v332 = vpop.f32.mrb[0].mxu0
    %v333 = vadd.f32 0.0, %v332
    %v334 = vpop.f32.mrb[0].mxu0
    %335 = vmatprep.mubr.f32.mxu0 %v178
    %336 = vmatmul.mubr.f32.gmra.mrb[0].mxu0 %v177
    %v337 = vpop.f32.mrb[0].mxu0
    %v338 = vadd.f32 0.0, %v337
    %v339 = vpop.f32.mrb[0].mxu0
    %340 = vmatprep.mubr.f32.mxu0 %v180
    %341 = vmatmul.mubr.f32.gmra.mrb[0].mxu0 %v179
    %v342 = vpop.f32.mrb[0].mxu0
    %v343 = vadd.f32 0.0, %v342
    %v344 = vpop.f32.mrb[0].mxu0
    %345 = vmatprep.mubr.f32.mxu0 %v182
    %346 = vmatmul.mubr.f32.gmra.mrb[0].mxu0 %v181
    %v347 = vpop.f32.mrb[0].mxu0
    %v348 = vadd.f32 0.0, %v347
    %v349 = vpop.f32.mrb[0].mxu0
    %350 = vmatprep.mubr.f32.mxu0 %v184
    %351 = vmatmul.mubr.f32.gmra.mrb[0].mxu0 %v183
    %v352 = vpop.f32.mrb[0].mxu0
    %v353 = vadd.f32 0.0, %v352
    %v354 = vpop.f32.mrb[0].mxu0
    %355 = vmatprep.mubr.f32.mxu0 %v186
    %356 = vmatmul.mubr.f32.gmra.mrb[0].mxu0 %v185
    %v357 = vpop.f32.mrb[0].mxu0
    %v358 = vadd.f32 0.0, %v357
    %v359 = vpop.f32.mrb[0].mxu0
    %360 = vmatprep.mubr.f32.mxu0 %v188
    %361 = vmatmul.mubr.f32.gmra.mrb[0].mxu0 %v187
    %v362 = vpop.f32.mrb[0].mxu0
    %v363 = vadd.f32 0.0, %v362
    %v364 = vpop.f32.mrb[0].mxu0
    %365 = vdwg.mxu0
    %v366 = vmul.f32 %v288, 11.313708
    %v367 = vmul.f32 %v293, 11.313708
    %v368 = vmul.f32 %v298, 11.313708
    %v369 = vmul.f32 %v303, 11.313708
    %v370 = vmul.f32 %v308, 11.313708
    %v371 = vmul.f32 %v313, 11.313708
    %v372 = vmul.f32 %v318, 11.313708
    %v373 = vmul.f32 %v323, 11.313708
    %v374 = vmul.f32 %v328, 11.313708
    %v375 = vmul.f32 %v333, 11.313708
    %v376 = vmul.f32 %v338, 11.313708
    %v377 = vmul.f32 %v343, 11.313708
    %v378 = vmul.f32 %v348, 11.313708
    %v379 = vmul.f32 %v353, 11.313708
    %v380 = vmul.f32 %v358, 11.313708
    %v381 = vmul.f32 %v363, 11.313708
    %382 = vst [vmem:[#allocation5] sm:$0xff] %v366
    %383 = vst [vmem:[#allocation5 + $0x8] sm:$0xff] %v367
    %384 = vst [vmem:[#allocation5 + $0x10] sm:$0xff] %v368
    %385 = vst [vmem:[#allocation5 + $0x18] sm:$0xff] %v369
    %386 = vst [vmem:[#allocation5 + $0x20] sm:$0xff] %v370
    %387 = vst [vmem:[#allocation5 + $0x28] sm:$0xff] %v371
    %388 = vst [vmem:[#allocation5 + $0x30] sm:$0xff] %v372
    %389 = vst [vmem:[#allocation5 + $0x38] sm:$0xff] %v373
    %390 = vst [vmem:[#allocation5 + $0x40] sm:$0xff] %v374
    %391 = vst [vmem:[#allocation5 + $0x48] sm:$0xff] %v375
    %392 = vst [vmem:[#allocation5 + $0x50] sm:$0xff] %v376
    %393 = vst [vmem:[#allocation5 + $0x58] sm:$0xff] %v377
    %394 = vst [vmem:[#allocation5 + $0x60] sm:$0xff] %v378
    %395 = vst [vmem:[#allocation5 + $0x68] sm:$0xff] %v379
    %396 = vst [vmem:[#allocation5 + $0x70] sm:$0xff] %v380
    %397 = vst [vmem:[#allocation5 + $0x78] sm:$0xff] %v381
    // Predicated region
    $region14: #{tpu_custom_call.1} parent=1 // pred_check
      _
    $region15: #{tpu_custom_call.1} parent=1 // pred_check_branch
      %399 = sbr.rel (0) target = $region17
    $region16: #{tpu_custom_call.1} parent=1 // pred_region
      %s401 = ssub.s32 2048, 2048
      %402 = vsyncadd [#allocation4], %s401
      %s403 = sshll.u32 [#allocation5], 4
      %s404 = int_to_ptr.vmem [resolvable:$true] %s403
      %409 = dma.vmem_to_hbm [thread:$0]  %s404, 2048, %s2, [#allocation4], 128, 128, 8
    $region17: #{tpu_custom_call.1} parent=1 // pred_fallthru
      _
    // Predicated region
    $region18: #{tpu_custom_call.1} parent=1 // pred_check
      _
    $region19: #{tpu_custom_call.1} parent=1 // pred_check_branch
      %411 = sbr.rel (0) target = $region21
    $region20: #{tpu_custom_call.1} parent=1 // pred_region
      %412 = dma.done [#allocation4], 2048
    $region21: #{tpu_custom_call.1} parent=1 // pred_fallthru
      _
    %413 = vsyncpa [#allocation3], 1
    %414 = vsyncpa [#allocation4], 1

</llo_original>
